<compile_context>
chip_gen: v6e
topology: v6e:2x2x1
jax: 0.10.0
libtpu: 0.0.40
codegen_flags: <defaults>
</compile_context>

<pallas_src>
import functools

import jax
import jax.numpy as jnp
from jax.experimental import pallas as pl
from jax.experimental.pallas import tpu as pltpu

FEAT_DIM = 2048  # hard-coded in nn.Linear(2048, class_num)


def _round_up(x, m):
    return ((x + m - 1) // m) * m


def _cdiv(a, b):
    return -(-a // b)


def _linear_kernel(x_ref, w_ref, o_ref):
    """out_tile = x_tile @ w  (single MXU matmul, f32 accumulation).

    Features are cast to bf16 in-kernel (no-op if already bf16): the convert is
    a VPU op hidden under the MXU and avoids an extra HBM pass in the wrapper.
    """
    x = x_ref[...].astype(jnp.bfloat16)
    o_ref[...] = jnp.dot(x, w_ref[...], preferred_element_type=jnp.float32)


@functools.partial(jax.jit, static_argnames=("class_num", "row_tile"))
def softmax_loss_forward(features, weight_t_padded, *, class_num, row_tile=512):
    """features: [N, 2048] (f32 or bf16), weight_t_padded: [2048, C_pad] bf16
    -> [N, class_num] f32."""
    n, k = features.shape
    k2, c_pad = weight_t_padded.shape
    assert k == k2 == FEAT_DIM
    assert c_pad % 128 == 0  # lane-dense output stores (unmasked vst)

    # Edge case: Faster R-CNN can produce zero proposals.
    if n == 0:
        return jnp.zeros((0, class_num), jnp.float32)

    # --- Row tiling ------------------------------------------------------
    # 16-row granularity (bf16 packs 2 rows per sublane -> full-vreg accesses).
    n16 = _round_up(n, 16)
    num_tiles = _cdiv(n16, row_tile)
    # v7x megacore: give the "parallel" axis >= 2 steps so both TCs get work.
    if num_tiles == 1 and n16 >= 32:
        num_tiles = 2
    # Spread rows as evenly as possible over the tiles (minimal padding).
    tn = _round_up(_cdiv(n16, num_tiles), 16)
    n_pad = tn * num_tiles
    if n_pad != n:
        features = jnp.pad(features, ((0, n_pad - n), (0, 0)))

    # --- VMEM budget (double-buffered x / w / out + slack) ----------------
    x_bytes = 2 * tn * k * features.dtype.itemsize
    w_bytes = 2 * k * c_pad * weight_t_padded.dtype.itemsize
    o_bytes = 2 * tn * c_pad * 4
    vmem_limit = min(x_bytes + w_bytes + o_bytes + (2 << 20), 56 << 20)

    out = pl.pallas_call(
        _linear_kernel,
        out_shape=jax.ShapeDtypeStruct((n_pad, c_pad), jnp.float32),
        grid_spec=pltpu.PrefetchScalarGridSpec(
            num_scalar_prefetch=0,
            grid=(num_tiles,),
            in_specs=[
                pl.BlockSpec((tn, k), lambda i: (i, 0)),
                # Constant block index -> weight stays resident in VMEM.
                pl.BlockSpec((k, c_pad), lambda i: (0, 0)),
            ],
            out_specs=pl.BlockSpec((tn, c_pad), lambda i: (i, 0)),
        ),
        compiler_params=pltpu.CompilerParams(
            dimension_semantics=("parallel",),  # row tiles shard over v7x's 2 TCs
            vmem_limit_bytes=int(vmem_limit),
        ),
    )(features, weight_t_padded)

    # One slice back to the logical shape. (Consumers that can mask padded
    # rows/classes themselves could take the padded slab directly.)
    return out[:n, :class_num]


class SoftmaxLossPallas:
    """Mirror of the PyTorch SoftmaxLoss module (forward only)."""

    def __init__(self, feat_dim, class_num, key):
        self.feat_dim = feat_dim
        self.class_num = class_num
        # nn.Linear(2048, class_num, bias=False), weight ~ N(0, 0.01)
        w = 0.01 * jax.random.normal(key, (class_num, FEAT_DIM), dtype=jnp.float32)
        self.weight = w  # [class_num, 2048]  (PyTorch layout, kept in f32)

        # Kernel-side weight: transpose to [2048, class_num], zero-pad the class
        # dim to a lane-dense multiple of 128, cast to bf16.  Built once and kept
        # resident across calls (device array reused by every pallas_call).
        c_pad = _round_up(class_num, 128)
        w_t = jnp.pad(w.T, ((0, 0), (0, c_pad - class_num)))
        self.weight_t_padded = jax.device_put(w_t.astype(jnp.bfloat16))

    def __call__(self, features, labels=None):
        if labels is not None:
            # Flattening of labels in the original code has no effect on output.
            labels = [val for sublist in labels for val in sublist]
        return softmax_loss_forward(
            features, self.weight_t_padded, class_num=self.class_num
        )


if __name__ == "__main__":
    key = jax.random.PRNGKey(0)
    k_w, k_x = jax.random.split(key)

    N_ROIS = 16          # number of ROI feature vectors
    CLASS_NUM = 21       # e.g. Pascal VOC (20 classes + background)

    module = SoftmaxLossPallas(feat_dim=2048, class_num=CLASS_NUM, key=k_w)

    features = jax.random.normal(k_x, (N_ROIS, FEAT_DIM), dtype=jnp.float32)
    labels = [[1, 2, 3], [4, 5]]  # flattened by forward, does not affect output

    roi_scores = jax.block_until_ready(module(features, labels))
    assert roi_scores.shape == (N_ROIS, CLASS_NUM)

    # bf16-matched reference (tight tolerance).
    ref_bf16 = jnp.dot(
        features.astype(jnp.bfloat16),
        module.weight.T.astype(jnp.bfloat16),
        preferred_element_type=jnp.float32,
    )
    assert jnp.allclose(roi_scores, ref_bf16, atol=1e-4, rtol=1e-4)

    # f32 reference (loose tolerance: bf16 operands / f32 accumulate).
    ref_f32 = features @ module.weight.T
    assert jnp.allclose(roi_scores, ref_f32, atol=2e-2, rtol=2e-2)

    # Second shape: exercises the multi-tile grid path (grid=(2,)) and a row
    # count that is not a multiple of 16 (padding + slice-back path).
    feats2 = jax.random.normal(jax.random.PRNGKey(1), (40, FEAT_DIM), jnp.float32)
    out2 = jax.block_until_ready(module(feats2, None))
    ref2 = jnp.dot(
        feats2.astype(jnp.bfloat16),
        module.weight.T.astype(jnp.bfloat16),
        preferred_element_type=jnp.float32,
    )
    assert out2.shape == (40, CLASS_NUM)
    assert jnp.allclose(out2, ref2, atol=1e-4, rtol=1e-4)

    print("KERNEL_OK")
</pallas_src>

<mosaic_0001>
module attributes {stable_mosaic.version = 11 : i64} {
  func.func @_linear_kernel(%arg0: i32, %arg1: memref<16x2048xf32, #tpu.memory_space<vmem>>, %arg2: memref<2048x128xbf16, #tpu.memory_space<vmem>>, %arg3: memref<16x128xf32, #tpu.memory_space<vmem>>) attributes {dimension_semantics = [#tpu.dimension_semantics<parallel>], iteration_bounds = array<i64: 1>, scalar_prefetch = 0 : i64, scratch_operands = 0 : i64, tpu.core_type = #tpu.core_type<tc>, window_params = [{transform_indices = @transform_0, window_bounds = array<i64: 16, 2048>}, {pipeline_mode = #tpu.pipeline_mode<synchronous>, transform_indices = @transform_1, window_bounds = array<i64: 2048, 128>}, {transform_indices = @transform_2, window_bounds = array<i64: 16, 128>}]} {
    %c0 = arith.constant 0 : index
    %c0_0 = arith.constant 0 : index
    %0 = vector.load %arg1[%c0, %c0_0] : memref<16x2048xf32, #tpu.memory_space<vmem>>, vector<16x2048xf32>
    %1 = arith.truncf %0 : vector<16x2048xf32> to vector<16x2048xbf16>
    %c0_1 = arith.constant 0 : index
    %c0_2 = arith.constant 0 : index
    %2 = vector.load %arg2[%c0_1, %c0_2] : memref<2048x128xbf16, #tpu.memory_space<vmem>>, vector<2048x128xbf16>
    %cst = arith.constant dense<0.000000e+00> : vector<16x128xf32>
    %3 = tpu.matmul %1, %2, %cst {dimension_numbers = #tpu.dot_dimension_numbers<[1], [0], [0], [1], [0, 0, 1, 1], [], []>} : vector<16x2048xbf16>, vector<2048x128xbf16>, vector<16x128xf32> -> vector<16x128xf32>
    %c0_3 = arith.constant 0 : index
    %c0_4 = arith.constant 0 : index
    %4 = vector.load %arg3[%c0_3, %c0_4] : memref<16x128xf32, #tpu.memory_space<vmem>>, vector<16x128xf32>
    tpu.vector_store %arg3[%c0_3, %c0_4], %3 {strides = array<i32>} : memref<16x128xf32, #tpu.memory_space<vmem>>, vector<16x128xf32>,
    return
  }
  func.func @transform_0(%arg0: i32) -> (i32, i32) {
    %c0_i32 = arith.constant 0 : i32
    %c0_i32_0 = arith.constant 0 : i32
    return %arg0, %c0_i32 : i32, i32
  }
  func.func @transform_1(%arg0: i32) -> (i32, i32) {
    %c0_i32 = arith.constant 0 : i32
    %c0_i32_0 = arith.constant 0 : i32
    %c0_i32_1 = arith.constant 0 : i32
    return %c0_i32, %c0_i32_0 : i32, i32
  }
  func.func @transform_2(%arg0: i32) -> (i32, i32) {
    %c0_i32 = arith.constant 0 : i32
    %c0_i32_0 = arith.constant 0 : i32
    return %arg0, %c0_i32 : i32, i32
  }
}

</mosaic_0001>

<llo_original>
// kernel: softmax_loss_forward.1
$region0: #{softmax_loss_forward.1}
  #allocation0 [shape = 'u32[]', space=smem, size = 0x4, offset = 0x4, fixed_abs, tag = 'smem constant byte address 0x4 - core index']
  #allocation1 [shape = 'u32[144,128]{1,0:T(1,128)}', space=vmem, size = 0x12000, scoped, tag = 'internal scratch']
  %s0 = inlined_call_operand.hbm [shape: f32[16,2048], index: 0, kind: input, shape index: {}]
  %s1 = inlined_call_operand.hbm [shape: bf16[2048,128], index: 1, kind: input, shape index: {}]
  %s2 = inlined_call_operand.hbm [shape: f32[16,128], index: 2, kind: output, shape index: {}]
  %s3 = sld [smem:[#allocation0]]
  $region26: #{softmax_loss_forward.1} parent=0
    _
  %s5 = ssub.s32 1, %s3
  %s6 = scalar_select 0, %s5, %s3
  $region1: #{softmax_loss_forward.1} parent=0
    #allocation2 [shape = 'u8[131072]{0}', space=vmem, size = 0x20000, scoped, tag = 'input window, operand 0, single buffered']
    #allocation3 [shape = 's32[1]{0}', space=sflag, size = 0x4, scoped, tag = 'scoped memory for softmax_loss_forward.1']
    #allocation4 [shape = 's32[1]{0}', space=sflag, size = 0x4, scoped, tag = 'scoped memory for softmax_loss_forward.1']
    #allocation5 [shape = 'u8[524288]{0}', space=vmem, size = 0x80000, scoped, tag = 'input window, operand 1, single buffered']
    #allocation6 [shape = 's32[1]{0}', space=sflag, size = 0x4, scoped, tag = 'scoped memory for softmax_loss_forward.1']
    #allocation7 [shape = 'u8[8192]{0}', space=vmem, size = 0x2000, scoped, tag = 'output window, operand 0, single buffered']
    %7 = vsyncpa [#allocation3], 0
    %8 = vsyncpa [#allocation6], 0
    %9 = vsyncpa [#allocation4], 0
    // Predicated region
    $region2: #{softmax_loss_forward.1} parent=1 // pred_check
      _
    $region3: #{softmax_loss_forward.1} parent=1 // pred_check_branch
      %11 = sbr.rel (0) target = $region5
    $region4: #{softmax_loss_forward.1} parent=1 // pred_region
      %s13 = ssub.s32 4096, 4096
      %14 = vsyncadd [#allocation3], %s13
      %s15 = sshll.u32 [#allocation2], 4
      %s16 = int_to_ptr.vmem [resolvable:$true] %s15
      %21 = dma.hbm_to_vmem [thread:$0]  %s0, 4096, %s16, [#allocation3], 2048, 2048, 128
    $region5: #{softmax_loss_forward.1} parent=1 // pred_fallthru
      _
    // Predicated region
    $region6: #{softmax_loss_forward.1} parent=1 // pred_check
      _
    $region7: #{softmax_loss_forward.1} parent=1 // pred_check_branch
      %23 = sbr.rel (0) target = $region9
    $region8: #{softmax_loss_forward.1} parent=1 // pred_region
      %s25 = ssub.s32 16384, 16384
      %26 = vsyncadd [#allocation6], %s25
      %s27 = sshll.u32 [#allocation5], 4
      %s28 = int_to_ptr.vmem [resolvable:$true] %s27
      %33 = dma.hbm_to_vmem [thread:$0]  %s1, 16384, %s28, [#allocation6], 64, 64, 4
    $region9: #{softmax_loss_forward.1} parent=1 // pred_fallthru
      _
    // Predicated region
    $region10: #{softmax_loss_forward.1} parent=1 // pred_check
      _
    $region11: #{softmax_loss_forward.1} parent=1 // pred_check_branch
      %35 = sbr.rel (0) target = $region13
    $region12: #{softmax_loss_forward.1} parent=1 // pred_region
      %36 = dma.done [#allocation3], 4096
    $region13: #{softmax_loss_forward.1} parent=1 // pred_fallthru
      _
    // Predicated region
    $region14: #{softmax_loss_forward.1} parent=1 // pred_check
      _
    $region15: #{softmax_loss_forward.1} parent=1 // pred_check_branch
      %38 = sbr.rel (0) target = $region17
    $region16: #{softmax_loss_forward.1} parent=1 // pred_region
      %39 = dma.done [#allocation6], 16384
    $region17: #{softmax_loss_forward.1} parent=1 // pred_fallthru
      _
    %v41 = vld [vmem:[#allocation2] sm:$0xff]
    %v42 = vld [vmem:[#allocation2 + $0x8] sm:$0xff]
    %v43 = vld [vmem:[#allocation2 + $0x10] sm:$0xff]
    %v44 = vld [vmem:[#allocation2 + $0x18] sm:$0xff]
    %v45 = vld [vmem:[#allocation2 + $0x20] sm:$0xff]
    %v46 = vld [vmem:[#allocation2 + $0x28] sm:$0xff]
    %v47 = vld [vmem:[#allocation2 + $0x30] sm:$0xff]
    %v48 = vld [vmem:[#allocation2 + $0x38] sm:$0xff]
    %v49 = vld [vmem:[#allocation2 + $0x40] sm:$0xff]
    %v50 = vld [vmem:[#allocation2 + $0x48] sm:$0xff]
    %v51 = vld [vmem:[#allocation2 + $0x50] sm:$0xff]
    %v52 = vld [vmem:[#allocation2 + $0x58] sm:$0xff]
    %v53 = vld [vmem:[#allocation2 + $0x60] sm:$0xff]
    %v54 = vld [vmem:[#allocation2 + $0x68] sm:$0xff]
    %v55 = vld [vmem:[#allocation2 + $0x70] sm:$0xff]
    %v56 = vld [vmem:[#allocation2 + $0x78] sm:$0xff]
    %v57 = vld [vmem:[#allocation2 + $0x80] sm:$0xff]
    %v58 = vld [vmem:[#allocation2 + $0x88] sm:$0xff]
    %v59 = vld [vmem:[#allocation2 + $0x90] sm:$0xff]
    %v60 = vld [vmem:[#allocation2 + $0x98] sm:$0xff]
    %v61 = vld [vmem:[#allocation2 + $0xa0] sm:$0xff]
    %v62 = vld [vmem:[#allocation2 + $0xa8] sm:$0xff]
    %v63 = vld [vmem:[#allocation2 + $0xb0] sm:$0xff]
    %v64 = vld [vmem:[#allocation2 + $0xb8] sm:$0xff]
    %v65 = vld [vmem:[#allocation2 + $0xc0] sm:$0xff]
    %v66 = vld [vmem:[#allocation2 + $0xc8] sm:$0xff]
    %v67 = vld [vmem:[#allocation2 + $0xd0] sm:$0xff]
    %v68 = vld [vmem:[#allocation2 + $0xd8] sm:$0xff]
    %v69 = vld [vmem:[#allocation2 + $0xe0] sm:$0xff]
    %v70 = vld [vmem:[#allocation2 + $0xe8] sm:$0xff]
    %v71 = vld [vmem:[#allocation2 + $0xf0] sm:$0xff]
    %v72 = vld [vmem:[#allocation2 + $0xf8] sm:$0xff]
    %v73 = vpack.c.bf16 %v57, %v41
    %v74 = vpack.c.bf16 %v58, %v42
    %v75 = vpack.c.bf16 %v59, %v43
    %v76 = vpack.c.bf16 %v60, %v44
    %v77 = vpack.c.bf16 %v61, %v45
    %v78 = vpack.c.bf16 %v62, %v46
    %v79 = vpack.c.bf16 %v63, %v47
    %v80 = vpack.c.bf16 %v64, %v48
    %v81 = vpack.c.bf16 %v65, %v49
    %v82 = vpack.c.bf16 %v66, %v50
    %v83 = vpack.c.bf16 %v67, %v51
    %v84 = vpack.c.bf16 %v68, %v52
    %v85 = vpack.c.bf16 %v69, %v53
    %v86 = vpack.c.bf16 %v70, %v54
    %v87 = vpack.c.bf16 %v71, %v55
    %v88 = vpack.c.bf16 %v72, %v56
    %v89 = vld [vmem:[#allocation5] sm:$0xf]
    %v90 = vld [vmem:[#allocation5 + $0x4] sm:$0xf]
    %v91 = vld [vmem:[#allocation5 + $0x8] sm:$0xf]
    %v92 = vld [vmem:[#allocation5 + $0xc] sm:$0xf]
    %v93 = vld [vmem:[#allocation5 + $0x10] sm:$0xf]
    %v94 = vld [vmem:[#allocation5 + $0x14] sm:$0xf]
    %v95 = vld [vmem:[#allocation5 + $0x18] sm:$0xf]
    %v96 = vld [vmem:[#allocation5 + $0x1c] sm:$0xf]
    %v97 = vld [vmem:[#allocation5 + $0x20] sm:$0xf]
    %v98 = vld [vmem:[#allocation5 + $0x24] sm:$0xf]
    %v99 = vld [vmem:[#allocation5 + $0x28] sm:$0xf]
    %v100 = vld [vmem:[#allocation5 + $0x2c] sm:$0xf]
    %v101 = vld [vmem:[#allocation5 + $0x30] sm:$0xf]
    %v102 = vld [vmem:[#allocation5 + $0x34] sm:$0xf]
    %v103 = vld [vmem:[#allocation5 + $0x38] sm:$0xf]
    %v104 = vld [vmem:[#allocation5 + $0x3c] sm:$0xf]
    %v105 = vld [vmem:[#allocation5 + $0x40] sm:$0xf]
    %v106 = vld [vmem:[#allocation5 + $0x44] sm:$0xf]
    %v107 = vld [vmem:[#allocation5 + $0x48] sm:$0xf]
    %v108 = vld [vmem:[#allocation5 + $0x4c] sm:$0xf]
    %v109 = vld [vmem:[#allocation5 + $0x50] sm:$0xf]
    %v110 = vld [vmem:[#allocation5 + $0x54] sm:$0xf]
    %v111 = vld [vmem:[#allocation5 + $0x58] sm:$0xf]
    %v112 = vld [vmem:[#allocation5 + $0x5c] sm:$0xf]
    %v113 = vld [vmem:[#allocation5 + $0x60] sm:$0xf]
    %v114 = vld [vmem:[#allocation5 + $0x64] sm:$0xf]
    %v115 = vld [vmem:[#allocation5 + $0x68] sm:$0xf]
    %v116 = vld [vmem:[#allocation5 + $0x6c] sm:$0xf]
    %v117 = vld [vmem:[#allocation5 + $0x70] sm:$0xf]
    %v118 = vld [vmem:[#allocation5 + $0x74] sm:$0xf]
    %v119 = vld [vmem:[#allocation5 + $0x78] sm:$0xf]
    %v120 = vld [vmem:[#allocation5 + $0x7c] sm:$0xf]
    %v121 = vld [vmem:[#allocation5 + $0x80] sm:$0xf]
    %v122 = vld [vmem:[#allocation5 + $0x84] sm:$0xf]
    %v123 = vld [vmem:[#allocation5 + $0x88] sm:$0xf]
    %v124 = vld [vmem:[#allocation5 + $0x8c] sm:$0xf]
    %v125 = vld [vmem:[#allocation5 + $0x90] sm:$0xf]
    %v126 = vld [vmem:[#allocation5 + $0x94] sm:$0xf]
    %v127 = vld [vmem:[#allocation5 + $0x98] sm:$0xf]
    %v128 = vld [vmem:[#allocation5 + $0x9c] sm:$0xf]
    %v129 = vld [vmem:[#allocation5 + $0xa0] sm:$0xf]
    %v130 = vld [vmem:[#allocation5 + $0xa4] sm:$0xf]
    %v131 = vld [vmem:[#allocation5 + $0xa8] sm:$0xf]
    %v132 = vld [vmem:[#allocation5 + $0xac] sm:$0xf]
    %v133 = vld [vmem:[#allocation5 + $0xb0] sm:$0xf]
    %v134 = vld [vmem:[#allocation5 + $0xb4] sm:$0xf]
    %v135 = vld [vmem:[#allocation5 + $0xb8] sm:$0xf]
    %v136 = vld [vmem:[#allocation5 + $0xbc] sm:$0xf]
    %v137 = vld [vmem:[#allocation5 + $0xc0] sm:$0xf]
    %v138 = vld [vmem:[#allocation5 + $0xc4] sm:$0xf]
    %v139 = vld [vmem:[#allocation5 + $0xc8] sm:$0xf]
    %v140 = vld [vmem:[#allocation5 + $0xcc] sm:$0xf]
    %v141 = vld [vmem:[#allocation5 + $0xd0] sm:$0xf]
    %v142 = vld [vmem:[#allocation5 + $0xd4] sm:$0xf]
    %v143 = vld [vmem:[#allocation5 + $0xd8] sm:$0xf]
    %v144 = vld [vmem:[#allocation5 + $0xdc] sm:$0xf]
    %v145 = vld [vmem:[#allocation5 + $0xe0] sm:$0xf]
    %v146 = vld [vmem:[#allocation5 + $0xe4] sm:$0xf]
    %v147 = vld [vmem:[#allocation5 + $0xe8] sm:$0xf]
    %v148 = vld [vmem:[#allocation5 + $0xec] sm:$0xf]
    %v149 = vld [vmem:[#allocation5 + $0xf0] sm:$0xf]
    %v150 = vld [vmem:[#allocation5 + $0xf4] sm:$0xf]
    %v151 = vld [vmem:[#allocation5 + $0xf8] sm:$0xf]
    %v152 = vld [vmem:[#allocation5 + $0xfc] sm:$0xf]
    %v153 = vld [vmem:[#allocation5 + $0x100] sm:$0xf]
    %v154 = vld [vmem:[#allocation5 + $0x104] sm:$0xf]
    %v155 = vld [vmem:[#allocation5 + $0x108] sm:$0xf]
    %v156 = vld [vmem:[#allocation5 + $0x10c] sm:$0xf]
    %v157 = vld [vmem:[#allocation5 + $0x110] sm:$0xf]
    %v158 = vld [vmem:[#allocation5 + $0x114] sm:$0xf]
    %v159 = vld [vmem:[#allocation5 + $0x118] sm:$0xf]
    %v160 = vld [vmem:[#allocation5 + $0x11c] sm:$0xf]
    %v161 = vld [vmem:[#allocation5 + $0x120] sm:$0xf]
    %v162 = vld [vmem:[#allocation5 + $0x124] sm:$0xf]
    %v163 = vld [vmem:[#allocation5 + $0x128] sm:$0xf]
    %v164 = vld [vmem:[#allocation5 + $0x12c] sm:$0xf]
    %v165 = vld [vmem:[#allocation5 + $0x130] sm:$0xf]
    %v166 = vld [vmem:[#allocation5 + $0x134] sm:$0xf]
    %v167 = vld [vmem:[#allocation5 + $0x138] sm:$0xf]
    %v168 = vld [vmem:[#allocation5 + $0x13c] sm:$0xf]
    %v169 = vld [vmem:[#allocation5 + $0x140] sm:$0xf]
    %v170 = vld [vmem:[#allocation5 + $0x144] sm:$0xf]
    %v171 = vld [vmem:[#allocation5 + $0x148] sm:$0xf]
    %v172 = vld [vmem:[#allocation5 + $0x14c] sm:$0xf]
    %v173 = vld [vmem:[#allocation5 + $0x150] sm:$0xf]
    %v174 = vld [vmem:[#allocation5 + $0x154] sm:$0xf]
    %v175 = vld [vmem:[#allocation5 + $0x158] sm:$0xf]
    %v176 = vld [vmem:[#allocation5 + $0x15c] sm:$0xf]
    %v177 = vld [vmem:[#allocation5 + $0x160] sm:$0xf]
    %v178 = vld [vmem:[#allocation5 + $0x164] sm:$0xf]
    %v179 = vld [vmem:[#allocation5 + $0x168] sm:$0xf]
    %v180 = vld [vmem:[#allocation5 + $0x16c] sm:$0xf]
    %v181 = vld [vmem:[#allocation5 + $0x170] sm:$0xf]
    %v182 = vld [vmem:[#allocation5 + $0x174] sm:$0xf]
    %v183 = vld [vmem:[#allocation5 + $0x178] sm:$0xf]
    %v184 = vld [vmem:[#allocation5 + $0x17c] sm:$0xf]
    %v185 = vld [vmem:[#allocation5 + $0x180] sm:$0xf]
    %v186 = vld [vmem:[#allocation5 + $0x184] sm:$0xf]
    %v187 = vld [vmem:[#allocation5 + $0x188] sm:$0xf]
    %v188 = vld [vmem:[#allocation5 + $0x18c] sm:$0xf]
    %v189 = vld [vmem:[#allocation5 + $0x190] sm:$0xf]
    %v190 = vld [vmem:[#allocation5 + $0x194] sm:$0xf]
    %v191 = vld [vmem:[#allocation5 + $0x198] sm:$0xf]
    %v192 = vld [vmem:[#allocation5 + $0x19c] sm:$0xf]
    %v193 = vld [vmem:[#allocation5 + $0x1a0] sm:$0xf]
    %v194 = vld [vmem:[#allocation5 + $0x1a4] sm:$0xf]
    %v195 = vld [vmem:[#allocation5 + $0x1a8] sm:$0xf]
    %v196 = vld [vmem:[#allocation5 + $0x1ac] sm:$0xf]
    %v197 = vld [vmem:[#allocation5 + $0x1b0] sm:$0xf]
    %v198 = vld [vmem:[#allocation5 + $0x1b4] sm:$0xf]
    %v199 = vld [vmem:[#allocation5 + $0x1b8] sm:$0xf]
    %v200 = vld [vmem:[#allocation5 + $0x1bc] sm:$0xf]
    %v201 = vld [vmem:[#allocation5 + $0x1c0] sm:$0xf]
    %v202 = vld [vmem:[#allocation5 + $0x1c4] sm:$0xf]
    %v203 = vld [vmem:[#allocation5 + $0x1c8] sm:$0xf]
    %v204 = vld [vmem:[#allocation5 + $0x1cc] sm:$0xf]
    %v205 = vld [vmem:[#allocation5 + $0x1d0] sm:$0xf]
    %v206 = vld [vmem:[#allocation5 + $0x1d4] sm:$0xf]
    %v207 = vld [vmem:[#allocation5 + $0x1d8] sm:$0xf]
    %v208 = vld [vmem:[#allocation5 + $0x1dc] sm:$0xf]
    %v209 = vld [vmem:[#allocation5 + $0x1e0] sm:$0xf]
    %v210 = vld [vmem:[#allocation5 + $0x1e4] sm:$0xf]
    %v211 = vld [vmem:[#allocation5 + $0x1e8] sm:$0xf]
    %v212 = vld [vmem:[#allocation5 + $0x1ec] sm:$0xf]
    %v213 = vld [vmem:[#allocation5 + $0x1f0] sm:$0xf]
    %v214 = vld [vmem:[#allocation5 + $0x1f4] sm:$0xf]
    %v215 = vld [vmem:[#allocation5 + $0x1f8] sm:$0xf]
    %v216 = vld [vmem:[#allocation5 + $0x1fc] sm:$0xf]
    %v217 = vld [vmem:[#allocation5 + $0x200] sm:$0xf]
    %v218 = vld [vmem:[#allocation5 + $0x204] sm:$0xf]
    %v219 = vld [vmem:[#allocation5 + $0x208] sm:$0xf]
    %v220 = vld [vmem:[#allocation5 + $0x20c] sm:$0xf]
    %v221 = vld [vmem:[#allocation5 + $0x210] sm:$0xf]
    %v222 = vld [vmem:[#allocation5 + $0x214] sm:$0xf]
    %v223 = vld [vmem:[#allocation5 + $0x218] sm:$0xf]
    %v224 = vld [vmem:[#allocation5 + $0x21c] sm:$0xf]
    %v225 = vld [vmem:[#allocation5 + $0x220] sm:$0xf]
    %v226 = vld [vmem:[#allocation5 + $0x224] sm:$0xf]
    %v227 = vld [vmem:[#allocation5 + $0x228] sm:$0xf]
    %v228 = vld [vmem:[#allocation5 + $0x22c] sm:$0xf]
    %v229 = vld [vmem:[#allocation5 + $0x230] sm:$0xf]
    %v230 = vld [vmem:[#allocation5 + $0x234] sm:$0xf]
    %v231 = vld [vmem:[#allocation5 + $0x238] sm:$0xf]
    %v232 = vld [vmem:[#allocation5 + $0x23c] sm:$0xf]
    %v233 = vld [vmem:[#allocation5 + $0x240] sm:$0xf]
    %v234 = vld [vmem:[#allocation5 + $0x244] sm:$0xf]
    %v235 = vld [vmem:[#allocation5 + $0x248] sm:$0xf]
    %v236 = vld [vmem:[#allocation5 + $0x24c] sm:$0xf]
    %v237 = vld [vmem:[#allocation5 + $0x250] sm:$0xf]
    %v238 = vld [vmem:[#allocation5 + $0x254] sm:$0xf]
    %v239 = vld [vmem:[#allocation5 + $0x258] sm:$0xf]
    %v240 = vld [vmem:[#allocation5 + $0x25c] sm:$0xf]
    %v241 = vld [vmem:[#allocation5 + $0x260] sm:$0xf]
    %v242 = vld [vmem:[#allocation5 + $0x264] sm:$0xf]
    %v243 = vld [vmem:[#allocation5 + $0x268] sm:$0xf]
    %v244 = vld [vmem:[#allocation5 + $0x26c] sm:$0xf]
    %v245 = vld [vmem:[#allocation5 + $0x270] sm:$0xf]
    %v246 = vld [vmem:[#allocation5 + $0x274] sm:$0xf]
    %v247 = vld [vmem:[#allocation5 + $0x278] sm:$0xf]
    %v248 = vld [vmem:[#allocation5 + $0x27c] sm:$0xf]
    %v249 = vld [vmem:[#allocation5 + $0x280] sm:$0xf]
    %v250 = vld [vmem:[#allocation5 + $0x284] sm:$0xf]
    %v251 = vld [vmem:[#allocation5 + $0x288] sm:$0xf]
    %v252 = vld [vmem:[#allocation5 + $0x28c] sm:$0xf]
    %v253 = vld [vmem:[#allocation5 + $0x290] sm:$0xf]
    %v254 = vld [vmem:[#allocation5 + $0x294] sm:$0xf]
    %v255 = vld [vmem:[#allocation5 + $0x298] sm:$0xf]
    %v256 = vld [vmem:[#allocation5 + $0x29c] sm:$0xf]
    %v257 = vld [vmem:[#allocation5 + $0x2a0] sm:$0xf]
    %v258 = vld [vmem:[#allocation5 + $0x2a4] sm:$0xf]
    %v259 = vld [vmem:[#allocation5 + $0x2a8] sm:$0xf]
    %v260 = vld [vmem:[#allocation5 + $0x2ac] sm:$0xf]
    %v261 = vld [vmem:[#allocation5 + $0x2b0] sm:$0xf]
    %v262 = vld [vmem:[#allocation5 + $0x2b4] sm:$0xf]
    %v263 = vld [vmem:[#allocation5 + $0x2b8] sm:$0xf]
    %v264 = vld [vmem:[#allocation5 + $0x2bc] sm:$0xf]
    %v265 = vld [vmem:[#allocation5 + $0x2c0] sm:$0xf]
    %v266 = vld [vmem:[#allocation5 + $0x2c4] sm:$0xf]
    %v267 = vld [vmem:[#allocation5 + $0x2c8] sm:$0xf]
    %v268 = vld [vmem:[#allocation5 + $0x2cc] sm:$0xf]
    %v269 = vld [vmem:[#allocation5 + $0x2d0] sm:$0xf]
    %v270 = vld [vmem:[#allocation5 + $0x2d4] sm:$0xf]
    %v271 = vld [vmem:[#allocation5 + $0x2d8] sm:$0xf]
    %v272 = vld [vmem:[#allocation5 + $0x2dc] sm:$0xf]
    %v273 = vld [vmem:[#allocation5 + $0x2e0] sm:$0xf]
    %v274 = vld [vmem:[#allocation5 + $0x2e4] sm:$0xf]
    %v275 = vld [vmem:[#allocation5 + $0x2e8] sm:$0xf]
    %v276 = vld [vmem:[#allocation5 + $0x2ec] sm:$0xf]
    %v277 = vld [vmem:[#allocation5 + $0x2f0] sm:$0xf]
    %v278 = vld [vmem:[#allocation5 + $0x2f4] sm:$0xf]
    %v279 = vld [vmem:[#allocation5 + $0x2f8] sm:$0xf]
    %v280 = vld [vmem:[#allocation5 + $0x2fc] sm:$0xf]
    %v281 = vld [vmem:[#allocation5 + $0x300] sm:$0xf]
    %v282 = vld [vmem:[#allocation5 + $0x304] sm:$0xf]
    %v283 = vld [vmem:[#allocation5 + $0x308] sm:$0xf]
    %v284 = vld [vmem:[#allocation5 + $0x30c] sm:$0xf]
    %v285 = vld [vmem:[#allocation5 + $0x310] sm:$0xf]
    %v286 = vld [vmem:[#allocation5 + $0x314] sm:$0xf]
    %v287 = vld [vmem:[#allocation5 + $0x318] sm:$0xf]
    %v288 = vld [vmem:[#allocation5 + $0x31c] sm:$0xf]
    %v289 = vld [vmem:[#allocation5 + $0x320] sm:$0xf]
    %v290 = vld [vmem:[#allocation5 + $0x324] sm:$0xf]
    %v291 = vld [vmem:[#allocation5 + $0x328] sm:$0xf]
    %v292 = vld [vmem:[#allocation5 + $0x32c] sm:$0xf]
    %v293 = vld [vmem:[#allocation5 + $0x330] sm:$0xf]
    %v294 = vld [vmem:[#allocation5 + $0x334] sm:$0xf]
    %v295 = vld [vmem:[#allocation5 + $0x338] sm:$0xf]
    %v296 = vld [vmem:[#allocation5 + $0x33c] sm:$0xf]
    %v297 = vld [vmem:[#allocation5 + $0x340] sm:$0xf]
    %v298 = vld [vmem:[#allocation5 + $0x344] sm:$0xf]
    %v299 = vld [vmem:[#allocation5 + $0x348] sm:$0xf]
    %v300 = vld [vmem:[#allocation5 + $0x34c] sm:$0xf]
    %v301 = vld [vmem:[#allocation5 + $0x350] sm:$0xf]
    %v302 = vld [vmem:[#allocation5 + $0x354] sm:$0xf]
    %v303 = vld [vmem:[#allocation5 + $0x358] sm:$0xf]
    %v304 = vld [vmem:[#allocation5 + $0x35c] sm:$0xf]
    %v305 = vld [vmem:[#allocation5 + $0x360] sm:$0xf]
    %v306 = vld [vmem:[#allocation5 + $0x364] sm:$0xf]
    %v307 = vld [vmem:[#allocation5 + $0x368] sm:$0xf]
    %v308 = vld [vmem:[#allocation5 + $0x36c] sm:$0xf]
    %v309 = vld [vmem:[#allocation5 + $0x370] sm:$0xf]
    %v310 = vld [vmem:[#allocation5 + $0x374] sm:$0xf]
    %v311 = vld [vmem:[#allocation5 + $0x378] sm:$0xf]
    %v312 = vld [vmem:[#allocation5 + $0x37c] sm:$0xf]
    %v313 = vld [vmem:[#allocation5 + $0x380] sm:$0xf]
    %v314 = vld [vmem:[#allocation5 + $0x384] sm:$0xf]
    %v315 = vld [vmem:[#allocation5 + $0x388] sm:$0xf]
    %v316 = vld [vmem:[#allocation5 + $0x38c] sm:$0xf]
    %v317 = vld [vmem:[#allocation5 + $0x390] sm:$0xf]
    %v318 = vld [vmem:[#allocation5 + $0x394] sm:$0xf]
    %v319 = vld [vmem:[#allocation5 + $0x398] sm:$0xf]
    %v320 = vld [vmem:[#allocation5 + $0x39c] sm:$0xf]
    %v321 = vld [vmem:[#allocation5 + $0x3a0] sm:$0xf]
    %v322 = vld [vmem:[#allocation5 + $0x3a4] sm:$0xf]
    %v323 = vld [vmem:[#allocation5 + $0x3a8] sm:$0xf]
    %v324 = vld [vmem:[#allocation5 + $0x3ac] sm:$0xf]
    %v325 = vld [vmem:[#allocation5 + $0x3b0] sm:$0xf]
    %v326 = vld [vmem:[#allocation5 + $0x3b4] sm:$0xf]
    %v327 = vld [vmem:[#allocation5 + $0x3b8] sm:$0xf]
    %v328 = vld [vmem:[#allocation5 + $0x3bc] sm:$0xf]
    %v329 = vld [vmem:[#allocation5 + $0x3c0] sm:$0xf]
    %v330 = vld [vmem:[#allocation5 + $0x3c4] sm:$0xf]
    %v331 = vld [vmem:[#allocation5 + $0x3c8] sm:$0xf]
    %v332 = vld [vmem:[#allocation5 + $0x3cc] sm:$0xf]
    %v333 = vld [vmem:[#allocation5 + $0x3d0] sm:$0xf]
    %v334 = vld [vmem:[#allocation5 + $0x3d4] sm:$0xf]
    %v335 = vld [vmem:[#allocation5 + $0x3d8] sm:$0xf]
    %v336 = vld [vmem:[#allocation5 + $0x3dc] sm:$0xf]
    %v337 = vld [vmem:[#allocation5 + $0x3e0] sm:$0xf]
    %v338 = vld [vmem:[#allocation5 + $0x3e4] sm:$0xf]
    %v339 = vld [vmem:[#allocation5 + $0x3e8] sm:$0xf]
    %v340 = vld [vmem:[#allocation5 + $0x3ec] sm:$0xf]
    %v341 = vld [vmem:[#allocation5 + $0x3f0] sm:$0xf]
    %v342 = vld [vmem:[#allocation5 + $0x3f4] sm:$0xf]
    %v343 = vld [vmem:[#allocation5 + $0x3f8] sm:$0xf]
    %v344 = vld [vmem:[#allocation5 + $0x3fc] sm:$0xf]
    %v601 = vunpack.c.l.b16 %v89
    %v602 = vunpack.c.l.b16 %v90
    %v603 = vunpack.c.l.b16 %v91
    %v604 = vunpack.c.l.b16 %v92
    %v605 = vunpack.c.l.b16 %v93
    %v606 = vunpack.c.l.b16 %v94
    %v607 = vunpack.c.l.b16 %v95
    %v608 = vunpack.c.l.b16 %v96
    %v609 = vunpack.c.l.b16 %v97
    %v610 = vunpack.c.l.b16 %v98
    %v611 = vunpack.c.l.b16 %v99
    %v612 = vunpack.c.l.b16 %v100
    %v613 = vunpack.c.l.b16 %v101
    %v614 = vunpack.c.l.b16 %v102
    %v615 = vunpack.c.l.b16 %v103
    %v616 = vunpack.c.l.b16 %v104
    %v617 = vunpack.c.l.b16 %v105
    %v618 = vunpack.c.l.b16 %v106
    %v619 = vunpack.c.l.b16 %v107
    %v620 = vunpack.c.l.b16 %v108
    %v621 = vunpack.c.l.b16 %v109
    %v622 = vunpack.c.l.b16 %v110
    %v623 = vunpack.c.l.b16 %v111
    %v624 = vunpack.c.l.b16 %v112
    %v625 = vunpack.c.l.b16 %v113
    %v626 = vunpack.c.l.b16 %v114
    %v627 = vunpack.c.l.b16 %v115
    %v628 = vunpack.c.l.b16 %v116
    %v629 = vunpack.c.l.b16 %v117
    %v630 = vunpack.c.l.b16 %v118
    %v631 = vunpack.c.l.b16 %v119
    %v632 = vunpack.c.l.b16 %v120
    %v633 = vunpack.c.l.b16 %v121
    %v634 = vunpack.c.l.b16 %v122
    %v635 = vunpack.c.l.b16 %v123
    %v636 = vunpack.c.l.b16 %v124
    %v637 = vunpack.c.l.b16 %v125
    %v638 = vunpack.c.l.b16 %v126
    %v639 = vunpack.c.l.b16 %v127
    %v640 = vunpack.c.l.b16 %v128
    %v641 = vunpack.c.l.b16 %v129
    %v642 = vunpack.c.l.b16 %v130
    %v643 = vunpack.c.l.b16 %v131
    %v644 = vunpack.c.l.b16 %v132
    %v645 = vunpack.c.l.b16 %v133
    %v646 = vunpack.c.l.b16 %v134
    %v647 = vunpack.c.l.b16 %v135
    %v648 = vunpack.c.l.b16 %v136
    %v649 = vunpack.c.l.b16 %v137
    %v650 = vunpack.c.l.b16 %v138
    %v651 = vunpack.c.l.b16 %v139
    %v652 = vunpack.c.l.b16 %v140
    %v653 = vunpack.c.l.b16 %v141
    %v654 = vunpack.c.l.b16 %v142
    %v655 = vunpack.c.l.b16 %v143
    %v656 = vunpack.c.l.b16 %v144
    %v657 = vunpack.c.l.b16 %v145
    %v658 = vunpack.c.l.b16 %v146
    %v659 = vunpack.c.l.b16 %v147
    %v660 = vunpack.c.l.b16 %v148
    %v661 = vunpack.c.l.b16 %v149
    %v662 = vunpack.c.l.b16 %v150
    %v663 = vunpack.c.l.b16 %v151
    %v664 = vunpack.c.l.b16 %v152
    %v665 = vunpack.c.l.b16 %v153
    %v666 = vunpack.c.l.b16 %v154
    %v667 = vunpack.c.l.b16 %v155
    %v668 = vunpack.c.l.b16 %v156
    %v669 = vunpack.c.l.b16 %v157
    %v670 = vunpack.c.l.b16 %v158
    %v671 = vunpack.c.l.b16 %v159
    %v672 = vunpack.c.l.b16 %v160
    %v673 = vunpack.c.l.b16 %v161
    %v674 = vunpack.c.l.b16 %v162
    %v675 = vunpack.c.l.b16 %v163
    %v676 = vunpack.c.l.b16 %v164
    %v677 = vunpack.c.l.b16 %v165
    %v678 = vunpack.c.l.b16 %v166
    %v679 = vunpack.c.l.b16 %v167
    %v680 = vunpack.c.l.b16 %v168
    %v681 = vunpack.c.l.b16 %v169
    %v682 = vunpack.c.l.b16 %v170
    %v683 = vunpack.c.l.b16 %v171
    %v684 = vunpack.c.l.b16 %v172
    %v685 = vunpack.c.l.b16 %v173
    %v686 = vunpack.c.l.b16 %v174
    %v687 = vunpack.c.l.b16 %v175
    %v688 = vunpack.c.l.b16 %v176
    %v689 = vunpack.c.l.b16 %v177
    %v690 = vunpack.c.l.b16 %v178
    %v691 = vunpack.c.l.b16 %v179
    %v692 = vunpack.c.l.b16 %v180
    %v693 = vunpack.c.l.b16 %v181
    %v694 = vunpack.c.l.b16 %v182
    %v695 = vunpack.c.l.b16 %v183
    %v696 = vunpack.c.l.b16 %v184
    %v697 = vunpack.c.l.b16 %v185
    %v698 = vunpack.c.l.b16 %v186
    %v699 = vunpack.c.l.b16 %v187
    %v700 = vunpack.c.l.b16 %v188
    %v701 = vunpack.c.l.b16 %v189
    %v702 = vunpack.c.l.b16 %v190
    %v703 = vunpack.c.l.b16 %v191
    %v704 = vunpack.c.l.b16 %v192
    %v705 = vunpack.c.l.b16 %v193
    %v706 = vunpack.c.l.b16 %v194
    %v707 = vunpack.c.l.b16 %v195
    %v708 = vunpack.c.l.b16 %v196
    %v709 = vunpack.c.l.b16 %v197
    %v710 = vunpack.c.l.b16 %v198
    %v711 = vunpack.c.l.b16 %v199
    %v712 = vunpack.c.l.b16 %v200
    %v713 = vunpack.c.l.b16 %v201
    %v714 = vunpack.c.l.b16 %v202
    %v715 = vunpack.c.l.b16 %v203
    %v716 = vunpack.c.l.b16 %v204
    %v717 = vunpack.c.l.b16 %v205
    %v718 = vunpack.c.l.b16 %v206
    %v719 = vunpack.c.l.b16 %v207
    %v720 = vunpack.c.l.b16 %v208
    %v721 = vunpack.c.l.b16 %v209
    %v722 = vunpack.c.l.b16 %v210
    %v723 = vunpack.c.l.b16 %v211
    %v724 = vunpack.c.l.b16 %v212
    %v725 = vunpack.c.l.b16 %v213
    %v726 = vunpack.c.l.b16 %v214
    %v727 = vunpack.c.l.b16 %v215
    %v728 = vunpack.c.l.b16 %v216
    %v729 = vunpack.c.l.b16 %v217
    %v730 = vunpack.c.l.b16 %v218
    %v731 = vunpack.c.l.b16 %v219
    %v732 = vunpack.c.l.b16 %v220
    %v733 = vunpack.c.l.b16 %v221
    %v734 = vunpack.c.l.b16 %v222
    %v735 = vunpack.c.l.b16 %v223
    %v736 = vunpack.c.l.b16 %v224
    %v737 = vunpack.c.l.b16 %v225
    %v738 = vunpack.c.l.b16 %v226
    %v739 = vunpack.c.l.b16 %v227
    %v740 = vunpack.c.l.b16 %v228
    %v741 = vunpack.c.l.b16 %v229
    %v742 = vunpack.c.l.b16 %v230
    %v743 = vunpack.c.l.b16 %v231
    %v744 = vunpack.c.l.b16 %v232
    %v745 = vunpack.c.l.b16 %v233
    %v746 = vunpack.c.l.b16 %v234
    %v747 = vunpack.c.l.b16 %v235
    %v748 = vunpack.c.l.b16 %v236
    %v749 = vunpack.c.l.b16 %v237
    %v750 = vunpack.c.l.b16 %v238
    %v751 = vunpack.c.l.b16 %v239
    %v752 = vunpack.c.l.b16 %v240
    %v753 = vunpack.c.l.b16 %v241
    %v754 = vunpack.c.l.b16 %v242
    %v755 = vunpack.c.l.b16 %v243
    %v756 = vunpack.c.l.b16 %v244
    %v757 = vunpack.c.l.b16 %v245
    %v758 = vunpack.c.l.b16 %v246
    %v759 = vunpack.c.l.b16 %v247
    %v760 = vunpack.c.l.b16 %v248
    %v761 = vunpack.c.l.b16 %v249
    %v762 = vunpack.c.l.b16 %v250
    %v763 = vunpack.c.l.b16 %v251
    %v764 = vunpack.c.l.b16 %v252
    %v765 = vunpack.c.l.b16 %v253
    %v766 = vunpack.c.l.b16 %v254
    %v767 = vunpack.c.l.b16 %v255
    %v768 = vunpack.c.l.b16 %v256
    %v769 = vunpack.c.l.b16 %v257
    %v770 = vunpack.c.l.b16 %v258
    %v771 = vunpack.c.l.b16 %v259
    %v772 = vunpack.c.l.b16 %v260
    %v773 = vunpack.c.l.b16 %v261
    %v774 = vunpack.c.l.b16 %v262
    %v775 = vunpack.c.l.b16 %v263
    %v776 = vunpack.c.l.b16 %v264
    %v777 = vunpack.c.l.b16 %v265
    %v778 = vunpack.c.l.b16 %v266
    %v779 = vunpack.c.l.b16 %v267
    %v780 = vunpack.c.l.b16 %v268
    %v781 = vunpack.c.l.b16 %v269
    %v782 = vunpack.c.l.b16 %v270
    %v783 = vunpack.c.l.b16 %v271
    %v784 = vunpack.c.l.b16 %v272
    %v785 = vunpack.c.l.b16 %v273
    %v786 = vunpack.c.l.b16 %v274
    %v787 = vunpack.c.l.b16 %v275
    %v788 = vunpack.c.l.b16 %v276
    %v789 = vunpack.c.l.b16 %v277
    %v790 = vunpack.c.l.b16 %v278
    %v791 = vunpack.c.l.b16 %v279
    %v792 = vunpack.c.l.b16 %v280
    %v793 = vunpack.c.l.b16 %v281
    %v794 = vunpack.c.l.b16 %v282
    %v795 = vunpack.c.l.b16 %v283
    %v796 = vunpack.c.l.b16 %v284
    %v797 = vunpack.c.l.b16 %v285
    %v798 = vunpack.c.l.b16 %v286
    %v799 = vunpack.c.l.b16 %v287
    %v800 = vunpack.c.l.b16 %v288
    %v801 = vunpack.c.l.b16 %v289
    %v802 = vunpack.c.l.b16 %v290
    %v803 = vunpack.c.l.b16 %v291
    %v804 = vunpack.c.l.b16 %v292
    %v805 = vunpack.c.l.b16 %v293
    %v806 = vunpack.c.l.b16 %v294
    %v807 = vunpack.c.l.b16 %v295
    %v808 = vunpack.c.l.b16 %v296
    %v809 = vunpack.c.l.b16 %v297
    %v810 = vunpack.c.l.b16 %v298
    %v811 = vunpack.c.l.b16 %v299
    %v812 = vunpack.c.l.b16 %v300
    %v813 = vunpack.c.l.b16 %v301
    %v814 = vunpack.c.l.b16 %v302
    %v815 = vunpack.c.l.b16 %v303
    %v816 = vunpack.c.l.b16 %v304
    %v817 = vunpack.c.l.b16 %v305
    %v818 = vunpack.c.l.b16 %v306
    %v819 = vunpack.c.l.b16 %v307
    %v820 = vunpack.c.l.b16 %v308
    %v821 = vunpack.c.l.b16 %v309
    %v822 = vunpack.c.l.b16 %v310
    %v823 = vunpack.c.l.b16 %v311
    %v824 = vunpack.c.l.b16 %v312
    %v825 = vunpack.c.l.b16 %v313
    %v826 = vunpack.c.l.b16 %v314
    %v827 = vunpack.c.l.b16 %v315
    %v828 = vunpack.c.l.b16 %v316
    %v829 = vunpack.c.l.b16 %v317
    %v830 = vunpack.c.l.b16 %v318
    %v831 = vunpack.c.l.b16 %v319
    %v832 = vunpack.c.l.b16 %v320
    %v833 = vunpack.c.l.b16 %v321
    %v834 = vunpack.c.l.b16 %v322
    %v835 = vunpack.c.l.b16 %v323
    %v836 = vunpack.c.l.b16 %v324
    %v837 = vunpack.c.l.b16 %v325
    %v838 = vunpack.c.l.b16 %v326
    %v839 = vunpack.c.l.b16 %v327
    %v840 = vunpack.c.l.b16 %v328
    %v841 = vunpack.c.l.b16 %v329
    %v842 = vunpack.c.l.b16 %v330
    %v843 = vunpack.c.l.b16 %v331
    %v844 = vunpack.c.l.b16 %v332
    %v845 = vunpack.c.l.b16 %v333
    %v846 = vunpack.c.l.b16 %v334
    %v847 = vunpack.c.l.b16 %v335
    %v848 = vunpack.c.l.b16 %v336
    %v849 = vunpack.c.l.b16 %v337
    %v850 = vunpack.c.l.b16 %v338
    %v851 = vunpack.c.l.b16 %v339
    %v852 = vunpack.c.l.b16 %v340
    %v853 = vunpack.c.l.b16 %v341
    %v854 = vunpack.c.l.b16 %v342
    %v855 = vunpack.c.l.b16 %v343
    %v856 = vunpack.c.l.b16 %v344
    %v857 = vpack.c.b16 %v602, %v601
    %v858 = vpack.c.b16 %v604, %v603
    %v859 = vpack.c.b16 %v606, %v605
    %v860 = vpack.c.b16 %v608, %v607
    %v861 = vpack.c.b16 %v610, %v609
    %v862 = vpack.c.b16 %v612, %v611
    %v863 = vpack.c.b16 %v614, %v613
    %v864 = vpack.c.b16 %v616, %v615
    %v865 = vpack.c.b16 %v618, %v617
    %v866 = vpack.c.b16 %v620, %v619
    %v867 = vpack.c.b16 %v622, %v621
    %v868 = vpack.c.b16 %v624, %v623
    %v869 = vpack.c.b16 %v626, %v625
    %v870 = vpack.c.b16 %v628, %v627
    %v871 = vpack.c.b16 %v630, %v629
    %v872 = vpack.c.b16 %v632, %v631
    %v873 = vpack.c.b16 %v634, %v633
    %v874 = vpack.c.b16 %v636, %v635
    %v875 = vpack.c.b16 %v638, %v637
    %v876 = vpack.c.b16 %v640, %v639
    %v877 = vpack.c.b16 %v642, %v641
    %v878 = vpack.c.b16 %v644, %v643
    %v879 = vpack.c.b16 %v646, %v645
    %v880 = vpack.c.b16 %v648, %v647
    %v881 = vpack.c.b16 %v650, %v649
    %v882 = vpack.c.b16 %v652, %v651
    %v883 = vpack.c.b16 %v654, %v653
    %v884 = vpack.c.b16 %v656, %v655
    %v885 = vpack.c.b16 %v658, %v657
    %v886 = vpack.c.b16 %v660, %v659
    %v887 = vpack.c.b16 %v662, %v661
    %v888 = vpack.c.b16 %v664, %v663
    %v889 = vpack.c.b16 %v666, %v665
    %v890 = vpack.c.b16 %v668, %v667
    %v891 = vpack.c.b16 %v670, %v669
    %v892 = vpack.c.b16 %v672, %v671
    %v893 = vpack.c.b16 %v674, %v673
    %v894 = vpack.c.b16 %v676, %v675
    %v895 = vpack.c.b16 %v678, %v677
    %v896 = vpack.c.b16 %v680, %v679
    %v897 = vpack.c.b16 %v682, %v681
    %v898 = vpack.c.b16 %v684, %v683
    %v899 = vpack.c.b16 %v686, %v685
    %v900 = vpack.c.b16 %v688, %v687
    %v901 = vpack.c.b16 %v690, %v689
    %v902 = vpack.c.b16 %v692, %v691
    %v903 = vpack.c.b16 %v694, %v693
    %v904 = vpack.c.b16 %v696, %v695
    %v905 = vpack.c.b16 %v698, %v697
    %v906 = vpack.c.b16 %v700, %v699
    %v907 = vpack.c.b16 %v702, %v701
    %v908 = vpack.c.b16 %v704, %v703
    %v909 = vpack.c.b16 %v706, %v705
    %v910 = vpack.c.b16 %v708, %v707
    %v911 = vpack.c.b16 %v710, %v709
    %v912 = vpack.c.b16 %v712, %v711
    %v913 = vpack.c.b16 %v714, %v713
    %v914 = vpack.c.b16 %v716, %v715
    %v915 = vpack.c.b16 %v718, %v717
    %v916 = vpack.c.b16 %v720, %v719
    %v917 = vpack.c.b16 %v722, %v721
    %v918 = vpack.c.b16 %v724, %v723
    %v919 = vpack.c.b16 %v726, %v725
    %v920 = vpack.c.b16 %v728, %v727
    %v921 = vpack.c.b16 %v730, %v729
    %v922 = vpack.c.b16 %v732, %v731
    %v923 = vpack.c.b16 %v734, %v733
    %v924 = vpack.c.b16 %v736, %v735
    %v925 = vpack.c.b16 %v738, %v737
    %v926 = vpack.c.b16 %v740, %v739
    %v927 = vpack.c.b16 %v742, %v741
    %v928 = vpack.c.b16 %v744, %v743
    %v929 = vpack.c.b16 %v746, %v745
    %v930 = vpack.c.b16 %v748, %v747
    %v931 = vpack.c.b16 %v750, %v749
    %v932 = vpack.c.b16 %v752, %v751
    %v933 = vpack.c.b16 %v754, %v753
    %v934 = vpack.c.b16 %v756, %v755
    %v935 = vpack.c.b16 %v758, %v757
    %v936 = vpack.c.b16 %v760, %v759
    %v937 = vpack.c.b16 %v762, %v761
    %v938 = vpack.c.b16 %v764, %v763
    %v939 = vpack.c.b16 %v766, %v765
    %v940 = vpack.c.b16 %v768, %v767
    %v941 = vpack.c.b16 %v770, %v769
    %v942 = vpack.c.b16 %v772, %v771
    %v943 = vpack.c.b16 %v774, %v773
    %v944 = vpack.c.b16 %v776, %v775
    %v945 = vpack.c.b16 %v778, %v777
    %v946 = vpack.c.b16 %v780, %v779
    %v947 = vpack.c.b16 %v782, %v781
    %v948 = vpack.c.b16 %v784, %v783
    %v949 = vpack.c.b16 %v786, %v785
    %v950 = vpack.c.b16 %v788, %v787
    %v951 = vpack.c.b16 %v790, %v789
    %v952 = vpack.c.b16 %v792, %v791
    %v953 = vpack.c.b16 %v794, %v793
    %v954 = vpack.c.b16 %v796, %v795
    %v955 = vpack.c.b16 %v798, %v797
    %v956 = vpack.c.b16 %v800, %v799
    %v957 = vpack.c.b16 %v802, %v801
    %v958 = vpack.c.b16 %v804, %v803
    %v959 = vpack.c.b16 %v806, %v805
    %v960 = vpack.c.b16 %v808, %v807
    %v961 = vpack.c.b16 %v810, %v809
    %v962 = vpack.c.b16 %v812, %v811
    %v963 = vpack.c.b16 %v814, %v813
    %v964 = vpack.c.b16 %v816, %v815
    %v965 = vpack.c.b16 %v818, %v817
    %v966 = vpack.c.b16 %v820, %v819
    %v967 = vpack.c.b16 %v822, %v821
    %v968 = vpack.c.b16 %v824, %v823
    %v969 = vpack.c.b16 %v826, %v825
    %v970 = vpack.c.b16 %v828, %v827
    %v971 = vpack.c.b16 %v830, %v829
    %v972 = vpack.c.b16 %v832, %v831
    %v973 = vpack.c.b16 %v834, %v833
    %v974 = vpack.c.b16 %v836, %v835
    %v975 = vpack.c.b16 %v838, %v837
    %v976 = vpack.c.b16 %v840, %v839
    %v977 = vpack.c.b16 %v842, %v841
    %v978 = vpack.c.b16 %v844, %v843
    %v979 = vpack.c.b16 %v846, %v845
    %v980 = vpack.c.b16 %v848, %v847
    %v981 = vpack.c.b16 %v850, %v849
    %v982 = vpack.c.b16 %v852, %v851
    %v983 = vpack.c.b16 %v854, %v853
    %v984 = vpack.c.b16 %v856, %v855
    %1113 = vmatprep.subr.bf16.mxu0 0
    %1114 = vmatpush1.bf16.msra.mxu0 %v864
    %1115 = vmatprep.subr.bf16.mxu0 0
    %1116 = vmatpush1.bf16.msra.mxu0 %v863
    %1117 = vmatprep.subr.bf16.mxu0 0
    %1118 = vmatpush1.bf16.msra.mxu0 %v862
    %1119 = vmatprep.subr.bf16.mxu0 0
    %1120 = vmatpush1.bf16.msra.mxu0 %v861
    %1121 = vmatprep.subr.bf16.mxu0 0
    %1122 = vmatpush1.bf16.msra.mxu0 %v860
    %1123 = vmatprep.subr.bf16.mxu0 0
    %1124 = vmatpush1.bf16.msra.mxu0 %v859
    %1125 = vmatprep.subr.bf16.mxu0 0
    %1126 = vmatpush1.bf16.msra.mxu0 %v858
    %1127 = vmatprep.subr.bf16.mxu0 0
    %1128 = vmatpush1.bf16.msra.mxu0 %v857
    %1129 = vmatprep.subr.bf16.mxu0 0
    %1130 = vmatpush2.bf16.msra.mxu0 %v872
    %1131 = vmatprep.subr.bf16.mxu0 0
    %1132 = vmatpush2.bf16.msra.mxu0 %v871
    %1133 = vmatprep.subr.bf16.mxu0 0
    %1134 = vmatpush2.bf16.msra.mxu0 %v870
    %1135 = vmatprep.subr.bf16.mxu0 0
    %1136 = vmatpush2.bf16.msra.mxu0 %v869
    %1137 = vmatprep.subr.bf16.mxu0 0
    %1138 = vmatpush2.bf16.msra.mxu0 %v868
    %1139 = vmatprep.subr.bf16.mxu0 0
    %1140 = vmatpush2.bf16.msra.mxu0 %v867
    %1141 = vmatprep.subr.bf16.mxu0 0
    %1142 = vmatpush2.bf16.msra.mxu0 %v866
    %1143 = vmatprep.subr.bf16.mxu0 0
    %1144 = vmatpush2.bf16.msra.mxu0 %v865
    %1145 = vmatprep.mubr.bf16.mxu0 %v74
    %1146 = vmatmul.mubr.bf16.gmra.mxu0 %v73
    %v1147 = vpop.f32.mrf.mxu0
    %v1148 = vadd.f32 0.0, %v1147
    %v1149 = vpop.f32.mrf.mxu0
    %v1150 = vpop.f32.mrf.mxu0
    %v1151 = vadd.f32 0.0, %v1150
    %v1152 = vpop.f32.mrf.mxu0
    %1153 = vdwg.mxu0
    %1154 = vmatprep.subr.bf16.mxu0 0
    %1155 = vmatpush1.bf16.msra.mxu0 %v880
    %1156 = vmatprep.subr.bf16.mxu0 0
    %1157 = vmatpush1.bf16.msra.mxu0 %v879
    %1158 = vmatprep.subr.bf16.mxu0 0
    %1159 = vmatpush1.bf16.msra.mxu0 %v878
    %1160 = vmatprep.subr.bf16.mxu0 0
    %1161 = vmatpush1.bf16.msra.mxu0 %v877
    %1162 = vmatprep.subr.bf16.mxu0 0
    %1163 = vmatpush1.bf16.msra.mxu0 %v876
    %1164 = vmatprep.subr.bf16.mxu0 0
    %1165 = vmatpush1.bf16.msra.mxu0 %v875
    %1166 = vmatprep.subr.bf16.mxu0 0
    %1167 = vmatpush1.bf16.msra.mxu0 %v874
    %1168 = vmatprep.subr.bf16.mxu0 0
    %1169 = vmatpush1.bf16.msra.mxu0 %v873
    %1170 = vmatprep.subr.bf16.mxu0 0
    %1171 = vmatpush2.bf16.msra.mxu0 %v888
    %1172 = vmatprep.subr.bf16.mxu0 0
    %1173 = vmatpush2.bf16.msra.mxu0 %v887
    %1174 = vmatprep.subr.bf16.mxu0 0
    %1175 = vmatpush2.bf16.msra.mxu0 %v886
    %1176 = vmatprep.subr.bf16.mxu0 0
    %1177 = vmatpush2.bf16.msra.mxu0 %v885
    %1178 = vmatprep.subr.bf16.mxu0 0
    %1179 = vmatpush2.bf16.msra.mxu0 %v884
    %1180 = vmatprep.subr.bf16.mxu0 0
    %1181 = vmatpush2.bf16.msra.mxu0 %v883
    %1182 = vmatprep.subr.bf16.mxu0 0
    %1183 = vmatpush2.bf16.msra.mxu0 %v882
    %1184 = vmatprep.subr.bf16.mxu0 0
    %1185 = vmatpush2.bf16.msra.mxu0 %v881
    %1186 = vmatprep.mubr.bf16.mxu0 %v76
    %1187 = vmatmul.mubr.bf16.gmra.mxu0 %v75
    %v1188 = vpop.f32.mrf.mxu0
    %v1189 = vadd.f32 %v1148, %v1188
    %v1190 = vpop.f32.mrf.mxu0
    %v1191 = vpop.f32.mrf.mxu0
    %v1192 = vadd.f32 %v1151, %v1191
    %v1193 = vpop.f32.mrf.mxu0
    %1194 = vdwg.mxu0
    %1195 = vmatprep.subr.bf16.mxu0 0
    %1196 = vmatpush1.bf16.msra.mxu0 %v896
    %1197 = vmatprep.subr.bf16.mxu0 0
    %1198 = vmatpush1.bf16.msra.mxu0 %v895
    %1199 = vmatprep.subr.bf16.mxu0 0
    %1200 = vmatpush1.bf16.msra.mxu0 %v894
    %1201 = vmatprep.subr.bf16.mxu0 0
    %1202 = vmatpush1.bf16.msra.mxu0 %v893
    %1203 = vmatprep.subr.bf16.mxu0 0
    %1204 = vmatpush1.bf16.msra.mxu0 %v892
    %1205 = vmatprep.subr.bf16.mxu0 0
    %1206 = vmatpush1.bf16.msra.mxu0 %v891
    %1207 = vmatprep.subr.bf16.mxu0 0
    %1208 = vmatpush1.bf16.msra.mxu0 %v890
    %1209 = vmatprep.subr.bf16.mxu0 0
    %1210 = vmatpush1.bf16.msra.mxu0 %v889
    %1211 = vmatprep.subr.bf16.mxu0 0
    %1212 = vmatpush2.bf16.msra.mxu0 %v904
    %1213 = vmatprep.subr.bf16.mxu0 0
    %1214 = vmatpush2.bf16.msra.mxu0 %v903
    %1215 = vmatprep.subr.bf16.mxu0 0
    %1216 = vmatpush2.bf16.msra.mxu0 %v902
    %1217 = vmatprep.subr.bf16.mxu0 0
    %1218 = vmatpush2.bf16.msra.mxu0 %v901
    %1219 = vmatprep.subr.bf16.mxu0 0
    %1220 = vmatpush2.bf16.msra.mxu0 %v900
    %1221 = vmatprep.subr.bf16.mxu0 0
    %1222 = vmatpush2.bf16.msra.mxu0 %v899
    %1223 = vmatprep.subr.bf16.mxu0 0
    %1224 = vmatpush2.bf16.msra.mxu0 %v898
    %1225 = vmatprep.subr.bf16.mxu0 0
    %1226 = vmatpush2.bf16.msra.mxu0 %v897
    %1227 = vmatprep.mubr.bf16.mxu0 %v78
    %1228 = vmatmul.mubr.bf16.gmra.mxu0 %v77
    %v1229 = vpop.f32.mrf.mxu0
    %v1230 = vadd.f32 %v1189, %v1229
    %v1231 = vpop.f32.mrf.mxu0
    %v1232 = vpop.f32.mrf.mxu0
    %v1233 = vadd.f32 %v1192, %v1232
    %v1234 = vpop.f32.mrf.mxu0
    %1235 = vdwg.mxu0
    %1236 = vmatprep.subr.bf16.mxu0 0
    %1237 = vmatpush1.bf16.msra.mxu0 %v912
    %1238 = vmatprep.subr.bf16.mxu0 0
    %1239 = vmatpush1.bf16.msra.mxu0 %v911
    %1240 = vmatprep.subr.bf16.mxu0 0
    %1241 = vmatpush1.bf16.msra.mxu0 %v910
    %1242 = vmatprep.subr.bf16.mxu0 0
    %1243 = vmatpush1.bf16.msra.mxu0 %v909
    %1244 = vmatprep.subr.bf16.mxu0 0
    %1245 = vmatpush1.bf16.msra.mxu0 %v908
    %1246 = vmatprep.subr.bf16.mxu0 0
    %1247 = vmatpush1.bf16.msra.mxu0 %v907
    %1248 = vmatprep.subr.bf16.mxu0 0
    %1249 = vmatpush1.bf16.msra.mxu0 %v906
    %1250 = vmatprep.subr.bf16.mxu0 0
    %1251 = vmatpush1.bf16.msra.mxu0 %v905
    %1252 = vmatprep.subr.bf16.mxu0 0
    %1253 = vmatpush2.bf16.msra.mxu0 %v920
    %1254 = vmatprep.subr.bf16.mxu0 0
    %1255 = vmatpush2.bf16.msra.mxu0 %v919
    %1256 = vmatprep.subr.bf16.mxu0 0
    %1257 = vmatpush2.bf16.msra.mxu0 %v918
    %1258 = vmatprep.subr.bf16.mxu0 0
    %1259 = vmatpush2.bf16.msra.mxu0 %v917
    %1260 = vmatprep.subr.bf16.mxu0 0
    %1261 = vmatpush2.bf16.msra.mxu0 %v916
    %1262 = vmatprep.subr.bf16.mxu0 0
    %1263 = vmatpush2.bf16.msra.mxu0 %v915
    %1264 = vmatprep.subr.bf16.mxu0 0
    %1265 = vmatpush2.bf16.msra.mxu0 %v914
    %1266 = vmatprep.subr.bf16.mxu0 0
    %1267 = vmatpush2.bf16.msra.mxu0 %v913
    %1268 = vmatprep.mubr.bf16.mxu0 %v80
    %1269 = vmatmul.mubr.bf16.gmra.mxu0 %v79
    %v1270 = vpop.f32.mrf.mxu0
    %v1271 = vadd.f32 %v1230, %v1270
    %v1272 = vpop.f32.mrf.mxu0
    %v1273 = vpop.f32.mrf.mxu0
    %v1274 = vadd.f32 %v1233, %v1273
    %v1275 = vpop.f32.mrf.mxu0
    %1276 = vdwg.mxu0
    %1277 = vmatprep.subr.bf16.mxu0 0
    %1278 = vmatpush1.bf16.msra.mxu0 %v928
    %1279 = vmatprep.subr.bf16.mxu0 0
    %1280 = vmatpush1.bf16.msra.mxu0 %v927
    %1281 = vmatprep.subr.bf16.mxu0 0
    %1282 = vmatpush1.bf16.msra.mxu0 %v926
    %1283 = vmatprep.subr.bf16.mxu0 0
    %1284 = vmatpush1.bf16.msra.mxu0 %v925
    %1285 = vmatprep.subr.bf16.mxu0 0
    %1286 = vmatpush1.bf16.msra.mxu0 %v924
    %1287 = vmatprep.subr.bf16.mxu0 0
    %1288 = vmatpush1.bf16.msra.mxu0 %v923
    %1289 = vmatprep.subr.bf16.mxu0 0
    %1290 = vmatpush1.bf16.msra.mxu0 %v922
    %1291 = vmatprep.subr.bf16.mxu0 0
    %1292 = vmatpush1.bf16.msra.mxu0 %v921
    %1293 = vmatprep.subr.bf16.mxu0 0
    %1294 = vmatpush2.bf16.msra.mxu0 %v936
    %1295 = vmatprep.subr.bf16.mxu0 0
    %1296 = vmatpush2.bf16.msra.mxu0 %v935
    %1297 = vmatprep.subr.bf16.mxu0 0
    %1298 = vmatpush2.bf16.msra.mxu0 %v934
    %1299 = vmatprep.subr.bf16.mxu0 0
    %1300 = vmatpush2.bf16.msra.mxu0 %v933
    %1301 = vmatprep.subr.bf16.mxu0 0
    %1302 = vmatpush2.bf16.msra.mxu0 %v932
    %1303 = vmatprep.subr.bf16.mxu0 0
    %1304 = vmatpush2.bf16.msra.mxu0 %v931
    %1305 = vmatprep.subr.bf16.mxu0 0
    %1306 = vmatpush2.bf16.msra.mxu0 %v930
    %1307 = vmatprep.subr.bf16.mxu0 0
    %1308 = vmatpush2.bf16.msra.mxu0 %v929
    %1309 = vmatprep.mubr.bf16.mxu0 %v82
    %1310 = vmatmul.mubr.bf16.gmra.mxu0 %v81
    %v1311 = vpop.f32.mrf.mxu0
    %v1312 = vadd.f32 %v1271, %v1311
    %v1313 = vpop.f32.mrf.mxu0
    %v1314 = vpop.f32.mrf.mxu0
    %v1315 = vadd.f32 %v1274, %v1314
    %v1316 = vpop.f32.mrf.mxu0
    %1317 = vdwg.mxu0
    %1318 = vmatprep.subr.bf16.mxu0 0
    %1319 = vmatpush1.bf16.msra.mxu0 %v944
    %1320 = vmatprep.subr.bf16.mxu0 0
    %1321 = vmatpush1.bf16.msra.mxu0 %v943
    %1322 = vmatprep.subr.bf16.mxu0 0
    %1323 = vmatpush1.bf16.msra.mxu0 %v942
    %1324 = vmatprep.subr.bf16.mxu0 0
    %1325 = vmatpush1.bf16.msra.mxu0 %v941
    %1326 = vmatprep.subr.bf16.mxu0 0
    %1327 = vmatpush1.bf16.msra.mxu0 %v940
    %1328 = vmatprep.subr.bf16.mxu0 0
    %1329 = vmatpush1.bf16.msra.mxu0 %v939
    %1330 = vmatprep.subr.bf16.mxu0 0
    %1331 = vmatpush1.bf16.msra.mxu0 %v938
    %1332 = vmatprep.subr.bf16.mxu0 0
    %1333 = vmatpush1.bf16.msra.mxu0 %v937
    %1334 = vmatprep.subr.bf16.mxu0 0
    %1335 = vmatpush2.bf16.msra.mxu0 %v952
    %1336 = vmatprep.subr.bf16.mxu0 0
    %1337 = vmatpush2.bf16.msra.mxu0 %v951
    %1338 = vmatprep.subr.bf16.mxu0 0
    %1339 = vmatpush2.bf16.msra.mxu0 %v950
    %1340 = vmatprep.subr.bf16.mxu0 0
    %1341 = vmatpush2.bf16.msra.mxu0 %v949
    %1342 = vmatprep.subr.bf16.mxu0 0
    %1343 = vmatpush2.bf16.msra.mxu0 %v948
    %1344 = vmatprep.subr.bf16.mxu0 0
    %1345 = vmatpush2.bf16.msra.mxu0 %v947
    %1346 = vmatprep.subr.bf16.mxu0 0
    %1347 = vmatpush2.bf16.msra.mxu0 %v946
    %1348 = vmatprep.subr.bf16.mxu0 0
    %1349 = vmatpush2.bf16.msra.mxu0 %v945
    %1350 = vmatprep.mubr.bf16.mxu0 %v84
    %1351 = vmatmul.mubr.bf16.gmra.mxu0 %v83
    %v1352 = vpop.f32.mrf.mxu0
    %v1353 = vadd.f32 %v1312, %v1352
    %v1354 = vpop.f32.mrf.mxu0
    %v1355 = vpop.f32.mrf.mxu0
    %v1356 = vadd.f32 %v1315, %v1355
    %v1357 = vpop.f32.mrf.mxu0
    %1358 = vdwg.mxu0
    %1359 = vmatprep.subr.bf16.mxu0 0
    %1360 = vmatpush1.bf16.msra.mxu0 %v960
    %1361 = vmatprep.subr.bf16.mxu0 0
    %1362 = vmatpush1.bf16.msra.mxu0 %v959
    %1363 = vmatprep.subr.bf16.mxu0 0
    %1364 = vmatpush1.bf16.msra.mxu0 %v958
    %1365 = vmatprep.subr.bf16.mxu0 0
    %1366 = vmatpush1.bf16.msra.mxu0 %v957
    %1367 = vmatprep.subr.bf16.mxu0 0
    %1368 = vmatpush1.bf16.msra.mxu0 %v956
    %1369 = vmatprep.subr.bf16.mxu0 0
    %1370 = vmatpush1.bf16.msra.mxu0 %v955
    %1371 = vmatprep.subr.bf16.mxu0 0
    %1372 = vmatpush1.bf16.msra.mxu0 %v954
    %1373 = vmatprep.subr.bf16.mxu0 0
    %1374 = vmatpush1.bf16.msra.mxu0 %v953
    %1375 = vmatprep.subr.bf16.mxu0 0
    %1376 = vmatpush2.bf16.msra.mxu0 %v968
    %1377 = vmatprep.subr.bf16.mxu0 0
    %1378 = vmatpush2.bf16.msra.mxu0 %v967
    %1379 = vmatprep.subr.bf16.mxu0 0
    %1380 = vmatpush2.bf16.msra.mxu0 %v966
    %1381 = vmatprep.subr.bf16.mxu0 0
    %1382 = vmatpush2.bf16.msra.mxu0 %v965
    %1383 = vmatprep.subr.bf16.mxu0 0
    %1384 = vmatpush2.bf16.msra.mxu0 %v964
    %1385 = vmatprep.subr.bf16.mxu0 0
    %1386 = vmatpush2.bf16.msra.mxu0 %v963
    %1387 = vmatprep.subr.bf16.mxu0 0
    %1388 = vmatpush2.bf16.msra.mxu0 %v962
    %1389 = vmatprep.subr.bf16.mxu0 0
    %1390 = vmatpush2.bf16.msra.mxu0 %v961
    %1391 = vmatprep.mubr.bf16.mxu0 %v86
    %1392 = vmatmul.mubr.bf16.gmra.mxu0 %v85
    %v1393 = vpop.f32.mrf.mxu0
    %v1394 = vadd.f32 %v1353, %v1393
    %v1395 = vpop.f32.mrf.mxu0
    %v1396 = vpop.f32.mrf.mxu0
    %v1397 = vadd.f32 %v1356, %v1396
    %v1398 = vpop.f32.mrf.mxu0
    %1399 = vdwg.mxu0
    %1400 = vmatprep.subr.bf16.mxu0 0
    %1401 = vmatpush1.bf16.msra.mxu0 %v976
    %1402 = vmatprep.subr.bf16.mxu0 0
    %1403 = vmatpush1.bf16.msra.mxu0 %v975
    %1404 = vmatprep.subr.bf16.mxu0 0
    %1405 = vmatpush1.bf16.msra.mxu0 %v974
    %1406 = vmatprep.subr.bf16.mxu0 0
    %1407 = vmatpush1.bf16.msra.mxu0 %v973
    %1408 = vmatprep.subr.bf16.mxu0 0
    %1409 = vmatpush1.bf16.msra.mxu0 %v972
    %1410 = vmatprep.subr.bf16.mxu0 0
    %1411 = vmatpush1.bf16.msra.mxu0 %v971
    %1412 = vmatprep.subr.bf16.mxu0 0
    %1413 = vmatpush1.bf16.msra.mxu0 %v970
    %1414 = vmatprep.subr.bf16.mxu0 0
    %1415 = vmatpush1.bf16.msra.mxu0 %v969
    %1416 = vmatprep.subr.bf16.mxu0 0
    %1417 = vmatpush2.bf16.msra.mxu0 %v984
    %1418 = vmatprep.subr.bf16.mxu0 0
    %1419 = vmatpush2.bf16.msra.mxu0 %v983
    %1420 = vmatprep.subr.bf16.mxu0 0
    %1421 = vmatpush2.bf16.msra.mxu0 %v982
    %1422 = vmatprep.subr.bf16.mxu0 0
    %1423 = vmatpush2.bf16.msra.mxu0 %v981
    %1424 = vmatprep.subr.bf16.mxu0 0
    %1425 = vmatpush2.bf16.msra.mxu0 %v980
    %1426 = vmatprep.subr.bf16.mxu0 0
    %1427 = vmatpush2.bf16.msra.mxu0 %v979
    %1428 = vmatprep.subr.bf16.mxu0 0
    %1429 = vmatpush2.bf16.msra.mxu0 %v978
    %1430 = vmatprep.subr.bf16.mxu0 0
    %1431 = vmatpush2.bf16.msra.mxu0 %v977
    %1432 = vmatprep.mubr.bf16.mxu0 %v88
    %1433 = vmatmul.mubr.bf16.gmra.mxu0 %v87
    %v1434 = vpop.f32.mrf.mxu0
    %v1435 = vadd.f32 %v1394, %v1434
    %v1436 = vpop.f32.mrf.mxu0
    %v1437 = vpop.f32.mrf.mxu0
    %v1438 = vadd.f32 %v1397, %v1437
    %v1439 = vpop.f32.mrf.mxu0
    %1440 = vdwg.mxu0
    %1441 = vst [vmem:[#allocation7] sm:$0xff] %v1435
    %1442 = vst [vmem:[#allocation7 + $0x8] sm:$0xff] %v1438
    // Predicated region
    $region18: #{softmax_loss_forward.1} parent=1 // pred_check
      _
    $region19: #{softmax_loss_forward.1} parent=1 // pred_check_branch
      %1444 = sbr.rel (0) target = $region21
    $region20: #{softmax_loss_forward.1} parent=1 // pred_region
      %s1446 = ssub.s32 256, 256
      %1447 = vsyncadd [#allocation4], %s1446
      %s1448 = sshll.u32 [#allocation7], 4
      %s1449 = int_to_ptr.vmem [resolvable:$true] %s1448
      %1454 = dma.vmem_to_hbm [thread:$0]  %s1449, 256, %s2, [#allocation4], 128, 128, 8
    $region21: #{softmax_loss_forward.1} parent=1 // pred_fallthru
      _
    // Predicated region
    $region22: #{softmax_loss_forward.1} parent=1 // pred_check
      _
    $region23: #{softmax_loss_forward.1} parent=1 // pred_check_branch
      %1456 = sbr.rel (0) target = $region25
    $region24: #{softmax_loss_forward.1} parent=1 // pred_region
      %1457 = dma.done [#allocation4], 256
    $region25: #{softmax_loss_forward.1} parent=1 // pred_fallthru
      _
    %1458 = vsyncpa [#allocation3], 1
    %1459 = vsyncpa [#allocation6], 1
    %1460 = vsyncpa [#allocation4], 1

</llo_original>
